<compile_context>
chip_gen: v5e
topology: v5e:2x2
jax: 0.10.0
libtpu: 0.0.40
codegen_flags: <defaults>
</compile_context>

<pallas_src>
import jax
import jax.numpy as jnp
from jax import lax
from jax.experimental import pallas as pl
from jax.experimental.pallas import tpu as pltpu


def _soft_clip_loss_kernel(logits_ref, img_lab_ref, txt_lab_ref, out_ref):
    z = logits_ref[...].astype(jnp.float32)      # (N, N) image-text logits
    il = img_lab_ref[...].astype(jnp.float32)    # (N, C) image diagnosis labels
    tl = txt_lab_ref[...].astype(jnp.float32)    # (N, C) text  diagnosis labels
    n = z.shape[0]

    # label_sim = img_labels @ text_labels.T   (contract over class axis, MXU)
    sim = lax.dot_general(il, tl, (((1,), (1,)), ((), ())),
                          preferred_element_type=jnp.float32)   # (N, N)

    # ---- image direction: softmax / log_softmax over rows (axis=1) ----
    sim_rmax = jnp.max(sim, axis=1, keepdims=True)
    e_row = jnp.exp(sim - sim_rmax)
    p_row = e_row / jnp.sum(e_row, axis=1, keepdims=True)

    z_rmax = jnp.max(z, axis=1, keepdims=True)
    zr = z - z_rmax
    logp_row = zr - jnp.log(jnp.sum(jnp.exp(zr), axis=1, keepdims=True))

    image_loss = -jnp.sum(p_row * logp_row) / n

    # ---- caption direction: softmax / log_softmax over columns (axis=0) ----
    # (identical to transposing both operands and reducing over rows)
    sim_cmax = jnp.max(sim, axis=0, keepdims=True)
    e_col = jnp.exp(sim - sim_cmax)
    p_col = e_col / jnp.sum(e_col, axis=0, keepdims=True)

    z_cmax = jnp.max(z, axis=0, keepdims=True)
    zc = z - z_cmax
    logp_col = zc - jnp.log(jnp.sum(jnp.exp(zc), axis=0, keepdims=True))

    caption_loss = -jnp.sum(p_col * logp_col) / n

    out_ref[0, 0] = 0.5 * (image_loss + caption_loss)


def image_text_contrastive_loss(logits, img_labels, text_labels, aug_logits=None):
    """Soft CLIP loss of ImageTextContrastiveLoss.

    logits:      (N, N) image-text similarity logits from the model.
    img_labels:  (N, C) image diagnosis labels (values in {-1, 0, 1}).
    text_labels: (N, C) text  diagnosis labels.
    aug_logits:  optional (N, N) logits against augmented text embeddings; if
                 given, the module averages the two soft-clip losses.
    """
    N = logits.shape[0]
    C = img_labels.shape[1]

    itemsize = jnp.dtype(logits.dtype).itemsize
    cost = pl.CostEstimate(
        flops=2 * N * N * C + 40 * N * N,
        transcendentals=4 * N * N,
        bytes_accessed=(logits.size * itemsize
                        + img_labels.size * jnp.dtype(img_labels.dtype).itemsize
                        + text_labels.size * jnp.dtype(text_labels.dtype).itemsize
                        + 4),
    )

    call = pl.pallas_call(
        _soft_clip_loss_kernel,
        out_shape=jax.ShapeDtypeStruct((1, 1), jnp.float32),
        grid_spec=pltpu.PrefetchScalarGridSpec(
            num_scalar_prefetch=0,
            grid=(1,),
            in_specs=[
                pl.BlockSpec((N, N), lambda i: (0, 0)),
                pl.BlockSpec((N, C), lambda i: (0, 0)),
                pl.BlockSpec((N, C), lambda i: (0, 0)),
            ],
            out_specs=pl.BlockSpec((1, 1), lambda i: (0, 0),
                                   memory_space=pltpu.MemorySpace.SMEM),
        ),
        compiler_params=pltpu.CompilerParams(
            dimension_semantics=("arbitrary",)),
        cost_estimate=cost,
    )

    loss = call(logits, img_labels, text_labels)[0, 0]
    if aug_logits is not None:
        aug_loss = call(aug_logits, img_labels, text_labels)[0, 0]
        loss = 0.5 * (loss + aug_loss)
    return loss


def _reference(logits, img_labels, text_labels):
    """Pure-JAX mirror of ImageTextContrastiveLoss._soft_clip_loss."""
    z = logits.astype(jnp.float32)
    label_sim = img_labels.astype(jnp.float32) @ text_labels.astype(jnp.float32).T

    def soft_xent(inp, tgt):
        logprobs = jax.nn.log_softmax(inp, axis=1)
        return -(tgt * logprobs).sum() / inp.shape[0]

    image_loss = soft_xent(z, jax.nn.softmax(label_sim, axis=1))
    caption_loss = soft_xent(z.T, jax.nn.softmax(label_sim.T, axis=1))
    return (image_loss + caption_loss) / 2


if __name__ == "__main__":
    key = jax.random.PRNGKey(0)
    k1, k2, k3 = jax.random.split(key, 3)

    N, C = 8, 32   # batch of image-text pairs, number of diagnosis classes

    # Logits that the external CLIP-style model would produce (model forward is
    # not part of this kernel). Labels are in {-1, 0, 1} as per the docstring.
    # TODO(synk): the encoder forward / compute_logits of `self.model` (and the
    # hard-CLIP branch when labels are None) are external modules, not kernels.
    logits = 3.0 * jax.random.normal(k1, (N, N), jnp.float32)
    img_labels = jax.random.randint(k2, (N, C), -1, 2).astype(jnp.float32)
    text_labels = jax.random.randint(k3, (N, C), -1, 2).astype(jnp.float32)

    loss = image_text_contrastive_loss(logits, img_labels, text_labels)
    loss = jax.block_until_ready(loss)

    ref = _reference(logits, img_labels, text_labels)
    assert jnp.allclose(loss, ref, rtol=1e-4, atol=1e-4), (loss, ref)
    print("KERNEL_OK")
</pallas_src>

<mosaic_0001>
module attributes {stable_mosaic.version = 11 : i64} {
  func.func @_soft_clip_loss_kernel(%arg0: i32, %arg1: memref<8x8xf32, #tpu.memory_space<vmem>>, %arg2: memref<8x32xf32, #tpu.memory_space<vmem>>, %arg3: memref<8x32xf32, #tpu.memory_space<vmem>>, %arg4: memref<1x1xf32, #tpu.memory_space<smem>>) attributes {dimension_semantics = [#tpu.dimension_semantics<arbitrary>], iteration_bounds = array<i64: 1>, scalar_prefetch = 0 : i64, scratch_operands = 0 : i64, tpu.core_type = #tpu.core_type<tc>, window_params = [{pipeline_mode = #tpu.pipeline_mode<synchronous>, transform_indices = @transform_0, window_bounds = array<i64: 8, 8>}, {pipeline_mode = #tpu.pipeline_mode<synchronous>, transform_indices = @transform_1, window_bounds = array<i64: 8, 32>}, {pipeline_mode = #tpu.pipeline_mode<synchronous>, transform_indices = @transform_2, window_bounds = array<i64: 8, 32>}, {transform_indices = @transform_3, window_bounds = array<i64: 1, 1>}]} {
    %c0 = arith.constant 0 : index
    %c0_0 = arith.constant 0 : index
    %0 = vector.load %arg1[%c0, %c0_0] : memref<8x8xf32, #tpu.memory_space<vmem>>, vector<8x8xf32>
    %c0_1 = arith.constant 0 : index
    %c0_2 = arith.constant 0 : index
    %1 = vector.load %arg2[%c0_1, %c0_2] : memref<8x32xf32, #tpu.memory_space<vmem>>, vector<8x32xf32>
    %c0_3 = arith.constant 0 : index
    %c0_4 = arith.constant 0 : index
    %2 = vector.load %arg3[%c0_3, %c0_4] : memref<8x32xf32, #tpu.memory_space<vmem>>, vector<8x32xf32>
    %cst = arith.constant dense<0.000000e+00> : vector<8x8xf32>
    %3 = tpu.matmul %1, %2, %cst {dimension_numbers = #tpu.dot_dimension_numbers<[1], [1], [0], [0], [0, 0, 1, 0], [], []>} : vector<8x32xf32>, vector<8x32xf32>, vector<8x8xf32> -> vector<8x8xf32>
    %cst_5 = arith.constant dense<0xFF800000> : vector<8xf32>
    %4 = vector.multi_reduction <maximumf>, %3, %cst_5 [1] : vector<8x8xf32> to vector<8xf32>
    %5 = vector.shape_cast %4 : vector<8xf32> to vector<8x1xf32>
    %6 = vector.broadcast %5 : vector<8x1xf32> to vector<8x8xf32>
    %7 = arith.subf %3, %6 : vector<8x8xf32>
    %8 = math.exp %7 : vector<8x8xf32>
    %cst_6 = arith.constant dense<0.000000e+00> : vector<8xf32>
    %9 = vector.multi_reduction <add>, %8, %cst_6 [1] : vector<8x8xf32> to vector<8xf32>
    %10 = vector.shape_cast %9 : vector<8xf32> to vector<8x1xf32>
    %11 = vector.broadcast %10 : vector<8x1xf32> to vector<8x8xf32>
    %12 = arith.divf %8, %11 : vector<8x8xf32>
    %cst_7 = arith.constant dense<0xFF800000> : vector<8xf32>
    %13 = vector.multi_reduction <maximumf>, %0, %cst_7 [1] : vector<8x8xf32> to vector<8xf32>
    %14 = vector.shape_cast %13 : vector<8xf32> to vector<8x1xf32>
    %15 = vector.broadcast %14 : vector<8x1xf32> to vector<8x8xf32>
    %16 = arith.subf %0, %15 : vector<8x8xf32>
    %17 = math.exp %16 : vector<8x8xf32>
    %cst_8 = arith.constant dense<0.000000e+00> : vector<8xf32>
    %18 = vector.multi_reduction <add>, %17, %cst_8 [1] : vector<8x8xf32> to vector<8xf32>
    %19 = vector.shape_cast %18 : vector<8xf32> to vector<8x1xf32>
    %20 = math.log %19 : vector<8x1xf32>
    %21 = vector.broadcast %20 : vector<8x1xf32> to vector<8x8xf32>
    %22 = arith.subf %16, %21 : vector<8x8xf32>
    %23 = arith.mulf %12, %22 : vector<8x8xf32>
    %24 = vector.shape_cast %23 : vector<8x8xf32> to vector<1x8x8xf32>
    %cst_9 = arith.constant dense<0.000000e+00> : vector<1xf32>
    %25 = vector.multi_reduction <add>, %24, %cst_9 [1, 2] : vector<1x8x8xf32> to vector<1xf32>
    %26 = vector.shape_cast %25 : vector<1xf32> to vector<1x1x1xf32>
    %27 = vector.extract %26[0, 0, 0] : f32 from vector<1x1x1xf32>
    %cst_10 = arith.constant 0.000000e+00 : f32
    %28 = arith.subf %cst_10, %27 : f32
    %cst_11 = arith.constant 8.000000e+00 : f32
    %29 = arith.divf %28, %cst_11 : f32
    %cst_12 = arith.constant dense<0xFF800000> : vector<8xf32>
    %30 = vector.multi_reduction <maximumf>, %3, %cst_12 [0] : vector<8x8xf32> to vector<8xf32>
    %31 = vector.shape_cast %30 : vector<8xf32> to vector<1x8xf32>
    %32 = vector.broadcast %31 : vector<1x8xf32> to vector<8x8xf32>
    %33 = arith.subf %3, %32 : vector<8x8xf32>
    %34 = math.exp %33 : vector<8x8xf32>
    %cst_13 = arith.constant dense<0.000000e+00> : vector<8xf32>
    %35 = vector.multi_reduction <add>, %34, %cst_13 [0] : vector<8x8xf32> to vector<8xf32>
    %36 = vector.shape_cast %35 : vector<8xf32> to vector<1x8xf32>
    %37 = vector.broadcast %36 : vector<1x8xf32> to vector<8x8xf32>
    %38 = arith.divf %34, %37 : vector<8x8xf32>
    %cst_14 = arith.constant dense<0xFF800000> : vector<8xf32>
    %39 = vector.multi_reduction <maximumf>, %0, %cst_14 [0] : vector<8x8xf32> to vector<8xf32>
    %40 = vector.shape_cast %39 : vector<8xf32> to vector<1x8xf32>
    %41 = vector.broadcast %40 : vector<1x8xf32> to vector<8x8xf32>
    %42 = arith.subf %0, %41 : vector<8x8xf32>
    %43 = math.exp %42 : vector<8x8xf32>
    %cst_15 = arith.constant dense<0.000000e+00> : vector<8xf32>
    %44 = vector.multi_reduction <add>, %43, %cst_15 [0] : vector<8x8xf32> to vector<8xf32>
    %45 = vector.shape_cast %44 : vector<8xf32> to vector<1x8xf32>
    %46 = math.log %45 : vector<1x8xf32>
    %47 = vector.broadcast %46 : vector<1x8xf32> to vector<8x8xf32>
    %48 = arith.subf %42, %47 : vector<8x8xf32>
    %49 = arith.mulf %38, %48 : vector<8x8xf32>
    %50 = vector.shape_cast %49 : vector<8x8xf32> to vector<1x8x8xf32>
    %cst_16 = arith.constant dense<0.000000e+00> : vector<1xf32>
    %51 = vector.multi_reduction <add>, %50, %cst_16 [1, 2] : vector<1x8x8xf32> to vector<1xf32>
    %52 = vector.shape_cast %51 : vector<1xf32> to vector<1x1x1xf32>
    %53 = vector.extract %52[0, 0, 0] : f32 from vector<1x1x1xf32>
    %cst_17 = arith.constant 0.000000e+00 : f32
    %54 = arith.subf %cst_17, %53 : f32
    %cst_18 = arith.constant 8.000000e+00 : f32
    %55 = arith.divf %54, %cst_18 : f32
    %56 = arith.addf %29, %55 : f32
    %cst_19 = arith.constant 5.000000e-01 : f32
    %57 = arith.mulf %cst_19, %56 : f32
    %c0_20 = arith.constant 0 : index
    %c0_21 = arith.constant 0 : index
    %58 = memref.load %arg4[%c0_20, %c0_21] : memref<1x1xf32, #tpu.memory_space<smem>>
    memref.store %57, %arg4[%c0_20, %c0_21] : memref<1x1xf32, #tpu.memory_space<smem>>
    return
  }
  func.func @transform_0(%arg0: i32) -> (i32, i32) {
    %c0_i32 = arith.constant 0 : i32
    %c0_i32_0 = arith.constant 0 : i32
    %c0_i32_1 = arith.constant 0 : i32
    return %c0_i32, %c0_i32_0 : i32, i32
  }
  func.func @transform_1(%arg0: i32) -> (i32, i32) {
    %c0_i32 = arith.constant 0 : i32
    %c0_i32_0 = arith.constant 0 : i32
    %c0_i32_1 = arith.constant 0 : i32
    return %c0_i32, %c0_i32_0 : i32, i32
  }
  func.func @transform_2(%arg0: i32) -> (i32, i32) {
    %c0_i32 = arith.constant 0 : i32
    %c0_i32_0 = arith.constant 0 : i32
    %c0_i32_1 = arith.constant 0 : i32
    return %c0_i32, %c0_i32_0 : i32, i32
  }
  func.func @transform_3(%arg0: i32) -> (i32, i32) {
    %c0_i32 = arith.constant 0 : i32
    %c0_i32_0 = arith.constant 0 : i32
    %c0_i32_1 = arith.constant 0 : i32
    return %c0_i32, %c0_i32_0 : i32, i32
  }
}

</mosaic_0001>

<llo_original>
// kernel: tpu_custom_call.1
$region0: #{tpu_custom_call.1}
  #allocation0 [shape = 'u32[]', space=smem, size = 0x4, offset = 0x4, fixed_abs, tag = 'smem constant byte address 0x4 - core index']
  #allocation1 [shape = 'u32[72,128]{1,0:T(1,128)}', space=vmem, size = 0x9000, scoped, tag = 'internal scratch']
  %s0 = inlined_call_operand.hbm [shape: f32[8,8], index: 0, kind: input, shape index: {}]
  %s1 = inlined_call_operand.hbm [shape: f32[8,32], index: 1, kind: input, shape index: {}]
  %s2 = inlined_call_operand.hbm [shape: f32[8,32], index: 2, kind: input, shape index: {}]
  %s3 = inlined_call_operand.hbm [shape: f32[1,1], index: 3, kind: output, shape index: {}]
  %s4 = sld [smem:[#allocation0]]
  $region34: #{tpu_custom_call.1} parent=0
    _
  %s6 = ssub.s32 1, %s4
  %s7 = scalar_select 0, %s6, %s4
  $region1: #{tpu_custom_call.1} parent=0
    #allocation2 [shape = 'u8[4096]{0}', space=vmem, size = 0x1000, scoped, tag = 'input window, operand 0, single buffered']
    #allocation3 [shape = 's32[1]{0}', space=sflag, size = 0x4, scoped, tag = 'scoped memory for tpu_custom_call.1']
    #allocation4 [shape = 's32[1]{0}', space=sflag, size = 0x4, scoped, tag = 'scoped memory for tpu_custom_call.1']
    #allocation5 [shape = 'u8[4096]{0}', space=vmem, size = 0x1000, scoped, tag = 'input window, operand 1, single buffered']
    #allocation6 [shape = 's32[1]{0}', space=sflag, size = 0x4, scoped, tag = 'scoped memory for tpu_custom_call.1']
    #allocation7 [shape = 'u8[4096]{0}', space=vmem, size = 0x1000, scoped, tag = 'input window, operand 2, single buffered']
    #allocation8 [shape = 'u8[512]{0}', space=smem, size = 0x200, scoped, tag = 'output window, operand 0, single buffered']
    %8 = vsyncpa [#allocation3], 0
    %9 = vsyncpa [#allocation6], 0
    %10 = vsyncpa [#allocation4], 0
    // Predicated region
    $region2: #{tpu_custom_call.1} parent=1 // pred_check
      _
    $region3: #{tpu_custom_call.1} parent=1 // pred_check_branch
      %12 = sbr.rel (0) target = $region5
    $region4: #{tpu_custom_call.1} parent=1 // pred_region
      %14 = vsyncadd [#allocation3], 0
      %s16 = sshll.u32 %s0, 4
      %s17 = int_to_ptr.hbm [resolvable:$true] %s16
      %s18 = sshll.u32 [#allocation2], 4
      %s19 = int_to_ptr.vmem [resolvable:$true] %s18
      %21 = dma.hbm_to_vmem [thread:$0]  %s17, 128, %s19, [#allocation3]
    $region5: #{tpu_custom_call.1} parent=1 // pred_fallthru
      _
    // Predicated region
    $region6: #{tpu_custom_call.1} parent=1 // pred_check
      _
    $region7: #{tpu_custom_call.1} parent=1 // pred_check_branch
      %23 = sbr.rel (0) target = $region9
    $region8: #{tpu_custom_call.1} parent=1 // pred_region
      %25 = vsyncadd [#allocation6], 0
      %s27 = sshll.u32 %s1, 4
      %s28 = int_to_ptr.hbm [resolvable:$true] %s27
      %s29 = sshll.u32 [#allocation5], 4
      %s30 = int_to_ptr.vmem [resolvable:$true] %s29
      %32 = dma.hbm_to_vmem [thread:$0]  %s28, 128, %s30, [#allocation6]
    $region9: #{tpu_custom_call.1} parent=1 // pred_fallthru
      _
    // Predicated region
    $region10: #{tpu_custom_call.1} parent=1 // pred_check
      _
    $region11: #{tpu_custom_call.1} parent=1 // pred_check_branch
      %34 = sbr.rel (0) target = $region13
    $region12: #{tpu_custom_call.1} parent=1 // pred_region
      %36 = vsyncadd [#allocation6], 0
      %s38 = sshll.u32 %s2, 4
      %s39 = int_to_ptr.hbm [resolvable:$true] %s38
      %s40 = sshll.u32 [#allocation7], 4
      %s41 = int_to_ptr.vmem [resolvable:$true] %s40
      %43 = dma.hbm_to_vmem [thread:$0]  %s39, 128, %s41, [#allocation6]
    $region13: #{tpu_custom_call.1} parent=1 // pred_fallthru
      _
    // Predicated region
    $region14: #{tpu_custom_call.1} parent=1 // pred_check
      _
    $region15: #{tpu_custom_call.1} parent=1 // pred_check_branch
      %45 = sbr.rel (0) target = $region17
    $region16: #{tpu_custom_call.1} parent=1 // pred_region
      %47 = dma.done [#allocation3], 128
    $region17: #{tpu_custom_call.1} parent=1 // pred_fallthru
      _
    // Predicated region
    $region18: #{tpu_custom_call.1} parent=1 // pred_check
      _
    $region19: #{tpu_custom_call.1} parent=1 // pred_check_branch
      %49 = sbr.rel (0) target = $region21
    $region20: #{tpu_custom_call.1} parent=1 // pred_region
      %51 = dma.done [#allocation6], 128
    $region21: #{tpu_custom_call.1} parent=1 // pred_fallthru
      _
    // Predicated region
    $region22: #{tpu_custom_call.1} parent=1 // pred_check
      _
    $region23: #{tpu_custom_call.1} parent=1 // pred_check_branch
      %53 = sbr.rel (0) target = $region25
    $region24: #{tpu_custom_call.1} parent=1 // pred_region
      %55 = dma.done [#allocation6], 128
    $region25: #{tpu_custom_call.1} parent=1 // pred_fallthru
      _
    %v56 = vld [vmem:[#allocation2] sm:$0xff]
    %v57 = vld [vmem:[#allocation5] sm:$0xff]
    %v58 = vld [vmem:[#allocation7] sm:$0xff]
    %vm59 = vcmask 261120
    %v61 = vsel %vm59, %v57, 0
    %v64 = vsel %vm59, %v58, 0
    %66 = vmatpush.xpose.msra.mxu0 0.0
    %67 = vmatpush.xpose.msra.mxu0 0.0
    %68 = vmatpush.xpose.msra.mxu0 0.0
    %69 = vmatpush.xpose.msra.mxu0 0.0
    %70 = vmatpush.xpose.msra.mxu0 0.0
    %71 = vmatpush.xpose.msra.mxu0 0.0
    %72 = vmatpush.xpose.msra.mxu0 0.0
    %73 = vmatpush.xpose.msra.mxu0 0.0
    %74 = vmatpush.xpose.msra.mxu0 0.0
    %75 = vmatpush.xpose.msra.mxu0 0.0
    %76 = vmatpush.xpose.msra.mxu0 0.0
    %77 = vmatpush.xpose.msra.mxu0 0.0
    %78 = vmatpush.xpose.msra.mxu0 0.0
    %79 = vmatpush.xpose.msra.mxu0 0.0
    %80 = vmatpush.xpose.msra.mxu0 0.0
    %81 = vmatpush.xpose.msra.mxu0 %v64
    %82 = vmatmul.f32.gmra.mxu0 %v61
    %v83 = vpop.f32.mrf.mxu0
    %v84 = vadd.f32 0.0, %v83
    %85 = vdwg.mxu0
    %vm86 = vcmask 64512
    %v87 = vsel %vm86, %v84, -inf
    %88 = vmax.xlane.f32.xlu0 %v87
    %v89 = vpop.xlane.xlu0 %88
    %v90 = vsub.f32 %v84, %v89
    %v91 = vmul.f32 %v90, 1.442695
    %v92 = vpow.pop %v91
    %v93 = vsel %vm86, %v92, 0.0
    %94 = vadd.xlane.f32.xlu0 %v93
    %v95 = vpop.xlane.xlu0 %94
    %v96 = vrcp.pop %v95
    %v97 = vmul.f32 %v95, %v96
    %v98 = vsub.f32 1.0, %v97
    %v99 = vmul.f32 %v96, %v98
    %v100 = vadd.f32 %v96, %v99
    %vm101 = vweird.f32 %v95
    %vm102 = vweird.f32 %v96
    %vm103 = vmor %vm101, %vm102
    %v104 = vsel %vm103, %v96, %v100
    %v105 = vand.u32 2147483647, %v95
    %vm106 = vcmp.eq.f32.partialorder %v105, 8.507059e+37
    %v107 = vand.u32 %v95, 2147483648
    %v108 = vor.u32 1.1754944e-38, %v107
    %v109 = vsel %vm106, %v108, %v104
    %v110 = vmul.f32 %v92, %v109
    %v111 = vsel %vm86, %v56, -inf
    %112 = vmax.xlane.f32.xlu0 %v111
    %v113 = vpop.xlane.xlu0 %112
    %v114 = vsub.f32 %v56, %v113
    %v115 = vmul.f32 %v114, 1.442695
    %v116 = vpow.pop %v115
    %v117 = vsel %vm86, %v116, 0.0
    %118 = vadd.xlane.f32.xlu0 %v117
    %v119 = vpop.xlane.xlu0 %118
    %v120 = vlog2.pop %v119
    %v121 = vmul.f32 %v120, 0.6931472
    %v122 = vsub.f32 %v114, %v121
    %v123 = vmul.f32 %v110, %v122
    %v124 = vsel %vm86, %v123, 0.0
    %125 = vadd.xlane.f32.xlu0 %v124
    %v126 = vpop.xlane.xlu0 %125
    %v127 = vrot.slane %v126, 4
    %v128 = vadd.f32 %v126, %v127
    %v129 = vrot.slane %v128, 2
    %v130 = vadd.f32 %v128, %v129
    %v131 = vrot.slane %v130, 1
    %v132 = vadd.f32 %v130, %v131
    %s133 = vtos %v132
    %s134 = ssub.f32 0.0, %s133
    %v135 = vrcp.pop 8.0
    %v136 = vmul.f32 8.0, %v135
    %v137 = vsub.f32 1.0, %v136
    %v138 = vmul.f32 %v135, %v137
    %v139 = vadd.f32 %v135, %v138
    %vm140 = vweird.f32 %v135
    %v141 = vsel %vm140, %v135, %v139
    %s142 = vtos %v141
    %s143 = smul.f32 %s134, %s142
    %v144 = vrot.slane %v87, 4
    %v145 = vmax.f32 %v87, %v144
    %v146 = vrot.slane %v145, 2
    %v147 = vmax.f32 %v145, %v146
    %v148 = vrot.slane %v147, 1
    %v149 = vmax.f32 %v147, %v148
    %v150 = vsub.f32 %v84, %v149
    %v151 = vmul.f32 %v150, 1.442695
    %v152 = vpow.pop %v151
    %v153 = vsel %vm86, %v152, 0.0
    %v154 = vrot.slane %v153, 4
    %v155 = vadd.f32 %v153, %v154
    %v156 = vrot.slane %v155, 2
    %v157 = vadd.f32 %v155, %v156
    %v158 = vrot.slane %v157, 1
    %v159 = vadd.f32 %v157, %v158
    %v160 = vrcp.pop %v159
    %v161 = vmul.f32 %v159, %v160
    %v162 = vsub.f32 1.0, %v161
    %v163 = vmul.f32 %v160, %v162
    %v164 = vadd.f32 %v160, %v163
    %vm165 = vweird.f32 %v159
    %vm166 = vweird.f32 %v160
    %vm167 = vmor %vm165, %vm166
    %v168 = vsel %vm167, %v160, %v164
    %v169 = vand.u32 2147483647, %v159
    %vm170 = vcmp.eq.f32.partialorder %v169, 8.507059e+37
    %v171 = vand.u32 %v159, 2147483648
    %v172 = vor.u32 1.1754944e-38, %v171
    %v173 = vsel %vm170, %v172, %v168
    %v174 = vmul.f32 %v152, %v173
    %v175 = vrot.slane %v111, 4
    %v176 = vmax.f32 %v111, %v175
    %v177 = vrot.slane %v176, 2
    %v178 = vmax.f32 %v176, %v177
    %v179 = vrot.slane %v178, 1
    %v180 = vmax.f32 %v178, %v179
    %v181 = vsub.f32 %v56, %v180
    %v182 = vmul.f32 %v181, 1.442695
    %v183 = vpow.pop %v182
    %v184 = vsel %vm86, %v183, 0.0
    %v185 = vrot.slane %v184, 4
    %v186 = vadd.f32 %v184, %v185
    %v187 = vrot.slane %v186, 2
    %v188 = vadd.f32 %v186, %v187
    %v189 = vrot.slane %v188, 1
    %v190 = vadd.f32 %v188, %v189
    %v191 = vlog2.pop %v190
    %v192 = vmul.f32 %v191, 0.6931472
    %v193 = vsub.f32 %v181, %v192
    %v194 = vmul.f32 %v174, %v193
    %v195 = vsel %vm86, %v194, 0.0
    %196 = vadd.xlane.f32.xlu0 %v195
    %v197 = vpop.xlane.xlu0 %196
    %v198 = vrot.slane %v197, 4
    %v199 = vadd.f32 %v197, %v198
    %v200 = vrot.slane %v199, 2
    %v201 = vadd.f32 %v199, %v200
    %v202 = vrot.slane %v201, 1
    %v203 = vadd.f32 %v201, %v202
    %s204 = vtos %v203
    %s205 = ssub.f32 0.0, %s204
    %v206 = vrcp.pop 8.0
    %v207 = vmul.f32 8.0, %v206
    %v208 = vsub.f32 1.0, %v207
    %v209 = vmul.f32 %v206, %v208
    %v210 = vadd.f32 %v206, %v209
    %vm211 = vweird.f32 %v206
    %v212 = vsel %vm211, %v206, %v210
    %s213 = vtos %v212
    %s214 = smul.f32 %s205, %s213
    %s215 = sadd.f32 %s143, %s214
    %s216 = smul.f32 %s215, 0.5
    %s217 = scalar_lea.smem [#allocation8], 0
    %218 = sst [smem:[%s217]] %s216
    // Predicated region
    $region26: #{tpu_custom_call.1} parent=1 // pred_check
      _
    $region27: #{tpu_custom_call.1} parent=1 // pred_check_branch
      %220 = sbr.rel (0) target = $region29
    $region28: #{tpu_custom_call.1} parent=1 // pred_region
      %222 = vsyncadd [#allocation4], 0
      %s224 = sshll.u32 %s3, 4
      %s225 = int_to_ptr.hbm [resolvable:$true] %s224
      %227 = dma.smem_to_hbm [#allocation8], 16, %s225, [#allocation4]
    $region29: #{tpu_custom_call.1} parent=1 // pred_fallthru
      _
    // Predicated region
    $region30: #{tpu_custom_call.1} parent=1 // pred_check
      _
    $region31: #{tpu_custom_call.1} parent=1 // pred_check_branch
      %229 = sbr.rel (0) target = $region33
    $region32: #{tpu_custom_call.1} parent=1 // pred_region
      %231 = dma.done [#allocation4], 16
    $region33: #{tpu_custom_call.1} parent=1 // pred_fallthru
      _
    %232 = sfence
    %233 = vsyncpa [#allocation3], 1
    %234 = vsyncpa [#allocation6], 1
    %235 = vsyncpa [#allocation4], 1

</llo_original>
